<compile_context>
chip_gen: v7x
topology: tpu7x:2x2x1
jax: 0.10.0
libtpu: 0.0.40
codegen_flags: <defaults>
</compile_context>

<pallas_src>
import functools
import math

import jax
import jax.numpy as jnp
import numpy as np
from jax.experimental import pallas as pl
from jax.experimental.pallas import tpu as pltpu

# ArcFace constants (match torch.sin/cos of tensor(0.5)).
_S = 8.0
_M = 0.5
_SIN_M = math.sin(_M)
_COS_M = math.cos(_M)
# Clamp for the rank-1 exp correction that lets one exp() per block serve both
# the row and the column sums.  Exact while the in-band logit spread stays
# below ~80 (i.e. logit_scale <~ 5 with s = 8); beyond that the column LSE
# degrades gracefully instead of producing inf * 0 NaNs.
_EXP_CAP = 80.0


# --------------------------------------------------------------------------
# Prologue: one-pass row L2 normalization (+ scale fold, + cast to MXU dtype).
# --------------------------------------------------------------------------
def _normalize_kernel(scale_ref, x_ref, o_ref):
    # NOTE: no epsilon, matching the reference module (a zero row -> inf/nan).
    x = x_ref[...].astype(jnp.float32)
    inv = jax.lax.rsqrt(jnp.sum(x * x, axis=1, keepdims=True))
    o_ref[...] = (x * (inv * scale_ref[0])).astype(o_ref.dtype)


def _divisor_tile(n, candidates):
    for c in candidates:
        if c <= n and n % c == 0:
            return c
    return n


def _normalize_rows(x, scale, out_dtype):
    n, d = x.shape
    br = _divisor_tile(n, (512, 256, 128, 64, 32, 16, 8))
    scale_arr = jnp.asarray(scale, jnp.float32).reshape(1)
    return pl.pallas_call(
        _normalize_kernel,
        out_shape=jax.ShapeDtypeStruct((n, d), out_dtype),
        grid_spec=pltpu.PrefetchScalarGridSpec(
            num_scalar_prefetch=0,
            grid=(n // br,),
            in_specs=[
                pl.BlockSpec(memory_space=pltpu.SMEM),        # scale, (1,)
                pl.BlockSpec((br, d), lambda i: (i, 0)),
            ],
            out_specs=pl.BlockSpec((br, d), lambda i: (i, 0)),
        ),
        compiler_params=pltpu.CompilerParams(
            dimension_semantics=("parallel",)),
    )(scale_arr, x)


# --------------------------------------------------------------------------
# Main kernel: streaming two-sided (row + column) online LSE with margin.
# --------------------------------------------------------------------------
def _arcclip_kernel(img_ref, txt_ref, row_ref, colm_ref, coll_ref,
                    m_row, l_row, d_row, *, tm, tn):
    i = pl.program_id(0)            # image row band (parallel across cores)
    j = pl.program_id(1)            # text column tile (sequential reduction)
    num_j = pl.num_programs(1)

    # Single MXU pass per block.  Operands arrive pre-normalized and the image
    # rows already carry logit_scale * s, so `plain` is the un-margined logits.
    # TODO(synk): if the Mosaic dump shows a per-step XLU transpose of the text
    # tile, pre-transpose text to (D, N) in the prologue and switch dims here.
    plain = jax.lax.dot_general(
        img_ref[...], txt_ref[...], (((1,), (1,)), ((), ())),
        preferred_element_type=jnp.float32)                     # (tm, tn) f32

    # Reset the per-row-band state at the start of the inner j loop.
    @pl.when(j == 0)
    def _():
        m_row[...] = jnp.full((tm, 1), -jnp.inf, jnp.float32)
        l_row[...] = jnp.zeros((tm, 1), jnp.float32)
        d_row[...] = jnp.zeros((tm, 1), jnp.float32)

    bmax_r = jnp.max(plain, axis=1, keepdims=True)              # (tm, 1)
    bmax_c = jnp.max(plain, axis=0, keepdims=True)              # (1, tn)

    m_old = m_row[...]
    m_new = jnp.maximum(m_old, bmax_r)

    # One (tm, tn) exp per block, shared by the row sums and (via a rank-1
    # correction) the column sums.
    p = jnp.exp(plain - m_new)                                  # (tm, tn)
    row_sum = jnp.sum(p, axis=1, keepdims=True)                 # (tm, 1)
    c0 = jnp.max(m_new)                                         # scalar ref
    e_r = jnp.exp(m_new - c0)                                   # (tm, 1) <= 1
    f_c = jnp.exp(jnp.minimum(c0 - bmax_c, _EXP_CAP))           # (1, tn)
    col_sum = f_c * jnp.sum(p * e_r, axis=0, keepdims=True)     # (1, tn)

    l_row[...] = l_row[...] * jnp.exp(m_old - m_new) + row_sum
    m_row[...] = m_new

    # Per-(band, col-tile) column partials (no carry across bands), written
    # lane-dense and combined in a tiny JAX epilogue.
    colm_ref[0] = bmax_c
    coll_ref[0] = col_sum

    # ArcFace margin only on blocks the global diagonal passes through.
    row0 = i * tm
    col0 = j * tn
    has_diag = jnp.logical_and(row0 < col0 + tn, col0 < row0 + tm)

    @pl.when(has_diag)
    def _():
        rg = row0 + jax.lax.broadcasted_iota(jnp.int32, (tm, tn), 0)
        cg = col0 + jax.lax.broadcasted_iota(jnp.int32, (tm, tn), 1)
        on_diag = (rg == cg).astype(jnp.float32)
        marg = plain * _COS_M - jnp.abs(plain) * _SIN_M         # sqrt(c^2)=|c|

        dm_r = jnp.sum(marg * on_diag, axis=1, keepdims=True)   # (tm, 1)
        dp_r = jnp.sum(plain * on_diag, axis=1, keepdims=True)
        hit_r = jnp.sum(on_diag, axis=1, keepdims=True)
        dm_c = jnp.sum(marg * on_diag, axis=0, keepdims=True)   # (1, tn)
        dp_c = jnp.sum(plain * on_diag, axis=0, keepdims=True)
        hit_c = jnp.sum(on_diag, axis=0, keepdims=True)

        # Swap exp(plain_diag - m) -> exp(margin_diag - m) inside the sums.
        corr_r = jnp.exp(dm_r - m_new) - jnp.exp(dp_r - m_new)
        corr_c = jnp.exp(dm_c - bmax_c) - jnp.exp(dp_c - bmax_c)
        l_row[...] += jnp.where(hit_r > 0, corr_r, 0.0)
        coll_ref[0] += jnp.where(hit_c > 0, corr_c, 0.0)
        d_row[...] += dm_r                                      # target logits

    # Per-row output for this band: lse_row - 2 * target (one target term for
    # the image-side CE and one for the text-side CE of the shared matrix).
    @pl.when(j == num_j - 1)
    def _():
        row_ref[...] = m_new + jnp.log(l_row[...]) - 2.0 * d_row[...]


# --------------------------------------------------------------------------
# Generation-aware tiling / VMEM budget.
# --------------------------------------------------------------------------
def _vmem_budget_bytes():
    try:
        cap = pltpu.get_tpu_info().vmem_capacity_bytes
    except Exception:
        cap = 64 * 1024 * 1024
    # ~75% of per-core VMEM: 48 MiB on v7x (64 MiB/TC), 96 MiB on v5e/v6e.
    return int(min(cap * 3 // 4, 96 * 1024 * 1024))


def _pick_tiles(n, d, itemsize):
    kind = ""
    try:
        kind = jax.devices()[0].device_kind.lower()
    except Exception:
        pass
    is_v5e = ("v5 lite" in kind) or ("v5e" in kind)
    budget = _vmem_budget_bytes()

    # Column (text) tile: 256 feeds the v6e/v7x 256x256 MXU; 128 on v5e keeps
    # the f32 logits block narrow (only 1 vector-store slot there).
    tn_cands = (128, 64, 32, 16, 8) if is_v5e else (256, 128, 64, 32, 16, 8)
    tn = _divisor_tile(n, tn_cands)

    # Row (image) tile: as large as the VMEM budget allows — arithmetic
    # intensity against the re-streamed text operand scales with tm.
    div_cands = [c for c in (1024, 512, 256, 128, 64, 32, 16, 8)
                 if c <= n and n % c == 0] or [n]
    tm = div_cands[-1]
    for cand in div_cands:
        need = (2 * cand * d * itemsize      # double-buffered image band
                + 3 * tn * d * itemsize      # text tile pipeline
                + 4 * cand * tn * 4          # logits / exp working set (f32)
                + 4 * cand * 128 * 4)        # (tm, 1) state, lane-padded
        if need <= budget // 2:
            tm = cand
            break
    return tm, tn


# --------------------------------------------------------------------------
# Wrapper.
# --------------------------------------------------------------------------
def arcclip_loss(image_features, text_features, logit_scale, *,
                 tm=None, tn=None, compute_dtype=jnp.bfloat16):
    """Single-device ArcCLIP forward loss.

    compute_dtype is the MXU operand dtype (bf16 by default — f32 matmuls take
    the slow multi-pass MXU path and double the streamed HBM bytes).
    """
    n, d = image_features.shape
    assert text_features.shape == (n, d)

    itemsize = jnp.dtype(compute_dtype).itemsize
    tm_auto, tn_auto = _pick_tiles(n, d, itemsize)
    tm = tm_auto if tm is None else tm
    tn = tn_auto if tn is None else tn
    assert n % tm == 0 and n % tn == 0
    num_i, num_j = n // tm, n // tn

    # Prologue: normalize each operand exactly once; fold logit_scale * s into
    # the image rows; emit MXU-ready operands.
    img_p = _normalize_rows(image_features, logit_scale * _S, compute_dtype)
    txt_p = _normalize_rows(text_features, 1.0, compute_dtype)

    kernel = functools.partial(_arcclip_kernel, tm=tm, tn=tn)
    row_out, colm, coll = pl.pallas_call(
        kernel,
        out_shape=(
            jax.ShapeDtypeStruct((n, 1), jnp.float32),                 # lse-2*tgt
            jax.ShapeDtypeStruct((num_i * num_j, 1, tn), jnp.float32),  # col max
            jax.ShapeDtypeStruct((num_i * num_j, 1, tn), jnp.float32),  # col sum
        ),
        grid_spec=pltpu.PrefetchScalarGridSpec(
            num_scalar_prefetch=0,
            grid=(num_i, num_j),
            in_specs=[
                pl.BlockSpec((tm, d), lambda i, j: (i, 0)),   # image band
                pl.BlockSpec((tn, d), lambda i, j: (j, 0)),   # text tile
                # TODO(synk): try pipeline_mode=pl.Buffered(3) on the text spec
                # on v6e to hide the text DMA at row-band boundaries.
            ],
            out_specs=[
                pl.BlockSpec((tm, 1), lambda i, j: (i, 0)),
                pl.BlockSpec((1, 1, tn), lambda i, j: (i * num_j + j, 0, 0)),
                pl.BlockSpec((1, 1, tn), lambda i, j: (i * num_j + j, 0, 0)),
            ],
            scratch_shapes=[
                pltpu.VMEM((tm, 1), jnp.float32),   # running row max
                pltpu.VMEM((tm, 1), jnp.float32),   # running row sum
                pltpu.VMEM((tm, 1), jnp.float32),   # target (diag) logits
            ],
        ),
        compiler_params=pltpu.CompilerParams(
            # No state crosses the row-band axis -> "parallel" (megacore /
            # v7x dual-TensorCore sharding); j carries the row-LSE recurrence.
            dimension_semantics=("parallel", "arbitrary"),
            vmem_limit_bytes=_vmem_budget_bytes(),
        ),
    )(img_p, txt_p)

    # Tiny epilogue (O(num_i * N) in plain XLA): combine per-band column
    # partials into column LSEs and reduce to the scalar loss.
    a = colm.reshape(num_i, n) + jnp.log(coll.reshape(num_i, n))
    amax = jnp.max(a, axis=0)
    col_lse = amax + jnp.log(jnp.sum(jnp.exp(a - amax), axis=0))
    return (jnp.sum(row_out) + jnp.sum(col_lse)) / (2.0 * n)


# --------------------------------------------------------------------------
# Pure-JAX f32 reference mirroring the PyTorch module (world_size == 1).
# --------------------------------------------------------------------------
def _reference_loss(image_features, text_features, logit_scale):
    def arc_face(i_feat, t_feat):
        w_l2 = jnp.linalg.norm(t_feat, axis=1, keepdims=True).T
        x_l2 = jnp.linalg.norm(i_feat, axis=1, keepdims=True)
        cos = logit_scale * (i_feat @ t_feat.T) / (x_l2 * w_l2)
        nn = i_feat.shape[0]
        one_hot = jnp.eye(nn, dtype=cos.dtype)
        sin = jnp.sqrt(cos ** 2)
        angle_sum = cos * _COS_M - sin * _SIN_M
        cos = angle_sum * one_hot + cos * (1 - one_hot)
        return cos * _S

    nn = text_features.shape[0]
    labels = jnp.arange(nn)

    def ce(logits):
        lse = jax.nn.logsumexp(logits, axis=1)
        tgt = logits[jnp.arange(nn), labels]
        return jnp.mean(lse - tgt)

    ci = arc_face(image_features, text_features)
    ct = arc_face(text_features, image_features)
    return 0.5 * (ce(ci) + ce(ct))


if __name__ == "__main__":
    key = jax.random.PRNGKey(0)
    k1, k2, k3, k4, k5, k6 = jax.random.split(key, 6)
    logit_scale = jnp.float32(2.0)

    # Case 1: single block, f32 MXU path (tight check).
    img1 = jax.random.normal(k1, (8, 32), jnp.float32)
    txt1 = jax.random.normal(k2, (8, 32), jnp.float32)
    got1 = jax.block_until_ready(
        arcclip_loss(img1, txt1, logit_scale, compute_dtype=jnp.float32))
    ref1 = jax.block_until_ready(_reference_loss(img1, txt1, logit_scale))
    np.testing.assert_allclose(np.asarray(got1), np.asarray(ref1),
                               rtol=2e-4, atol=2e-4)

    # Case 2: 2x2 grid (square tiles): multi-block row LSE, multi-band column
    # combine, diagonal-only margin blocks; f32 MXU path (tight check).
    img2 = jax.random.normal(k3, (16, 32), jnp.float32)
    txt2 = jax.random.normal(k4, (16, 32), jnp.float32)
    got2 = jax.block_until_ready(
        arcclip_loss(img2, txt2, logit_scale, tm=8, tn=8,
                     compute_dtype=jnp.float32))
    ref2 = jax.block_until_ready(_reference_loss(img2, txt2, logit_scale))
    np.testing.assert_allclose(np.asarray(got2), np.asarray(ref2),
                               rtol=2e-4, atol=2e-4)

    # Case 3: rectangular tiles (tm != tn, diagonal crossing block borders),
    # default bf16 MXU fast path (looser tolerance vs the f32 reference).
    img3 = jax.random.normal(k5, (32, 64), jnp.float32)
    txt3 = jax.random.normal(k6, (32, 64), jnp.float32)
    got3 = jax.block_until_ready(arcclip_loss(img3, txt3, logit_scale,
                                              tm=16, tn=8))
    ref3 = jax.block_until_ready(_reference_loss(img3, txt3, logit_scale))
    np.testing.assert_allclose(np.asarray(got3), np.asarray(ref3),
                               rtol=5e-2, atol=5e-2)

    print("KERNEL_OK")
</pallas_src>

<mosaic_0001>
module attributes {stable_mosaic.version = 11 : i64} {
  func.func @_normalize_kernel(%arg0: i32, %arg1: memref<1xf32, #tpu.memory_space<smem>>, %arg2: memref<8x32xf32, #tpu.memory_space<vmem>>, %arg3: memref<8x32xf32, #tpu.memory_space<vmem>>) attributes {dimension_semantics = [#tpu.dimension_semantics<parallel>], iteration_bounds = array<i64: 1>, scalar_prefetch = 0 : i64, scratch_operands = 0 : i64, tpu.core_type = #tpu.core_type<tc>, window_params = [{transform_indices = @transform_0, window_bounds = array<i64: 1>}, {transform_indices = @transform_1, window_bounds = array<i64: 8, 32>}, {transform_indices = @transform_2, window_bounds = array<i64: 8, 32>}]} {
    %c0 = arith.constant 0 : index
    %c0_0 = arith.constant 0 : index
    %0 = vector.load %arg2[%c0, %c0_0] : memref<8x32xf32, #tpu.memory_space<vmem>>, vector<8x32xf32>
    %1 = arith.mulf %0, %0 : vector<8x32xf32>
    %cst = arith.constant dense<0.000000e+00> : vector<8xf32>
    %2 = vector.multi_reduction <add>, %1, %cst [1] : vector<8x32xf32> to vector<8xf32>
    %3 = vector.shape_cast %2 : vector<8xf32> to vector<8x1xf32>
    %4 = math.rsqrt %3 : vector<8x1xf32>
    %c0_1 = arith.constant 0 : index
    %5 = memref.load %arg1[%c0_1] : memref<1xf32, #tpu.memory_space<smem>>
    %6 = vector.broadcast %5 : f32 to vector<8x1xf32>
    %7 = arith.mulf %4, %6 : vector<8x1xf32>
    %8 = vector.broadcast %7 : vector<8x1xf32> to vector<8x32xf32>
    %9 = arith.mulf %0, %8 : vector<8x32xf32>
    %c0_2 = arith.constant 0 : index
    %c0_3 = arith.constant 0 : index
    %10 = vector.load %arg3[%c0_2, %c0_3] : memref<8x32xf32, #tpu.memory_space<vmem>>, vector<8x32xf32>
    tpu.vector_store %arg3[%c0_2, %c0_3], %9 {strides = array<i32>} : memref<8x32xf32, #tpu.memory_space<vmem>>, vector<8x32xf32>,
    return
  }
  func.func @transform_0(%arg0: i32) -> i32 {
    %c0_i32 = arith.constant 0 : i32
    %c0_i32_0 = arith.constant 0 : i32
    return %c0_i32 : i32
  }
  func.func @transform_1(%arg0: i32) -> (i32, i32) {
    %c0_i32 = arith.constant 0 : i32
    %c0_i32_0 = arith.constant 0 : i32
    return %arg0, %c0_i32 : i32, i32
  }
  func.func @transform_2(%arg0: i32) -> (i32, i32) {
    %c0_i32 = arith.constant 0 : i32
    %c0_i32_0 = arith.constant 0 : i32
    return %arg0, %c0_i32 : i32, i32
  }
}

</mosaic_0001>

<llo_original>
// kernel: tpu_custom_call.1
$region0: #{tpu_custom_call.1}
  #allocation0 [shape = 'u32[]', space=smem, size = 0x4, offset = 0x4, fixed_abs, tag = 'smem constant byte address 0x4 - core index']
  #allocation1 [shape = 'u32[144,128]{1,0:T(1,128)}', space=vmem, size = 0x12000, scoped, tag = 'internal scratch']
  #allocation2 [shape = 'f32[1]{0:T(128)S(6)}', space=smem, size = 0x200, scoped, tag = 'scoped memory for tpu_custom_call.1']
  %s0 = inlined_call_operand.<no memory space> [shape: f32[1], index: 0, kind: input, shape index: {}]
  %s1 = inlined_call_operand.hbm [shape: f32[8,32], index: 1, kind: input, shape index: {}]
  %s2 = inlined_call_operand.hbm [shape: f32[8,32], index: 2, kind: output, shape index: {}]
  %s3 = sld [smem:[#allocation0]]
  $region22: #{tpu_custom_call.1} parent=0
    _
  %s5 = ssub.s32 1, %s3
  %s6 = scalar_select 0, %s5, %s3
  %7 = sst [smem:[#allocation2]] %s0
  $region1: #{tpu_custom_call.1} parent=0
    #allocation3 [shape = 'u8[4096]{0}', space=vmem, size = 0x1000, scoped, tag = 'input window, operand 1, single buffered']
    #allocation4 [shape = 's32[1]{0}', space=sflag, size = 0x4, scoped, tag = 'scoped memory for tpu_custom_call.1']
    #allocation5 [shape = 's32[1]{0}', space=sflag, size = 0x4, scoped, tag = 'scoped memory for tpu_custom_call.1']
    #allocation6 [shape = 'u8[4096]{0}', space=vmem, size = 0x1000, scoped, tag = 'output window, operand 0, single buffered']
    %8 = vsyncpa [#allocation4], 0
    %9 = vsyncpa [#allocation5], 0
    // Predicated region
    $region2: #{tpu_custom_call.1} parent=1 // pred_check
      _
    $region3: #{tpu_custom_call.1} parent=1 // pred_check_branch
      %11 = sbr.rel (0) target = $region5
    $region4: #{tpu_custom_call.1} parent=1 // pred_region
      _
    $region5: #{tpu_custom_call.1} parent=1 // pred_fallthru
      _
    // Predicated region
    $region6: #{tpu_custom_call.1} parent=1 // pred_check
      _
    $region7: #{tpu_custom_call.1} parent=1 // pred_check_branch
      %13 = sbr.rel (0) target = $region9
    $region8: #{tpu_custom_call.1} parent=1 // pred_region
      %s15 = ssub.s32 128, 128
      %16 = vsyncadd [#allocation4], %s15
      %s18 = sshll.u32 [#allocation3], 4
      %s19 = int_to_ptr.vmem [resolvable:$true] %s18
      %21 = dma.hbm_to_vmem [thread:$0]  %s1, 128, %s19, [#allocation4]
    $region9: #{tpu_custom_call.1} parent=1 // pred_fallthru
      _
    // Predicated region
    $region10: #{tpu_custom_call.1} parent=1 // pred_check
      _
    $region11: #{tpu_custom_call.1} parent=1 // pred_check_branch
      %23 = sbr.rel (0) target = $region13
    $region12: #{tpu_custom_call.1} parent=1 // pred_region
      %24 = dma.done [#allocation4], 128
    $region13: #{tpu_custom_call.1} parent=1 // pred_fallthru
      _
    %v25 = vld [vmem:[#allocation3] sm:$0xff]
    %v26 = vmul.f32 %v25, %v25
    %vm27 = vcmask 261120
    %v28 = vsel %vm27, %v26, 0.0
    %29 = vadd.xlane.f32.xlu0 %v28
    %v30 = vpop.xlane.xlu0 %29
    %v31 = vrsqrt.pop %v30
    %s32 = sld [smem:[#allocation2]]
    %v33 = vstv %s32
    %v34 = vmul.f32 %v31, %v33
    %v35 = vmul.f32 %v25, %v34
    %36 = vst.msk [vmem:[#allocation6] sm:$0xff] %vm27, %v35
    // Predicated region
    $region14: #{tpu_custom_call.1} parent=1 // pred_check
      _
    $region15: #{tpu_custom_call.1} parent=1 // pred_check_branch
      %38 = sbr.rel (0) target = $region17
    $region16: #{tpu_custom_call.1} parent=1 // pred_region
      %s40 = ssub.s32 128, 128
      %41 = vsyncadd [#allocation5], %s40
      %s43 = sshll.u32 [#allocation6], 4
      %s44 = int_to_ptr.vmem [resolvable:$true] %s43
      %46 = dma.vmem_to_hbm [thread:$0]  %s44, 128, %s2, [#allocation5]
    $region17: #{tpu_custom_call.1} parent=1 // pred_fallthru
      _
    // Predicated region
    $region18: #{tpu_custom_call.1} parent=1 // pred_check
      _
    $region19: #{tpu_custom_call.1} parent=1 // pred_check_branch
      %48 = sbr.rel (0) target = $region21
    $region20: #{tpu_custom_call.1} parent=1 // pred_region
      %49 = dma.done [#allocation5], 128
    $region21: #{tpu_custom_call.1} parent=1 // pred_fallthru
      _
    %50 = vsyncpa [#allocation4], 1
    %51 = vsyncpa [#allocation5], 1

</llo_original>
